<compile_context>
chip_gen: v5e
topology: v5e:2x2
jax: 0.10.0
libtpu: 0.0.40
codegen_flags: <defaults>
</compile_context>

<pallas_src>
import functools

import jax
import jax.numpy as jnp
from jax import lax
from jax.experimental import pallas as pl
from jax.experimental.pallas import tpu as pltpu

DEFAULT_EPS = 1e-5
DEFAULT_MOMENTUM = 0.9


def _round_up(x, mult):
    return ((x + mult - 1) // mult) * mult


def _chip_vmem_limit_bytes():
    """Scoped-VMEM limit derived from the chip (~3/4 of physical, clamped)."""
    cap = 64 * 1024 * 1024                       # conservative default (v7x per-TC)
    try:
        info = pltpu.get_tpu_info()
        cap = int(getattr(info, "vmem_capacity_bytes", cap) or cap)
    except Exception:
        pass
    limit = (cap * 3) // 4
    return max(32 * 1024 * 1024, min(limit, 96 * 1024 * 1024))


_VMEM_LIMIT_BYTES = _chip_vmem_limit_bytes()
# Apply pass keeps ~4x tile live (double-buffered input + output); the stats
# pass only double-buffers the input, so it gets roughly twice the budget.
_APPLY_TILE_BYTES = min(8 * 1024 * 1024, _VMEM_LIMIT_BYTES // 5)
_STATS_TILE_BYTES = min(16 * 1024 * 1024, _VMEM_LIMIT_BYTES // 3)


def _pick_m_tile(m, itemsize, budget, min_rows):
    """Lane tile: multiple of 128 (lane-dense), never larger than M."""
    if m < 128:
        return m                                  # full extent (single tiny block)
    max_m = max(128, (budget // (max(min_rows, 1) * itemsize)) // 128 * 128)
    m_floor = (m // 128) * 128                    # largest 128-multiple <= m
    m_tile = min(m_floor, max_m)
    if m % 128 == 0:
        # Prefer an exact divisor: no partial lane blocks, no tail masking.
        while m % m_tile:
            m_tile -= 128
    return m_tile


def _pick_rows_tile(nrows, m_tile, itemsize, budget):
    """Row tile: multiple of 8 (or the full row count when nrows < 8)."""
    if nrows <= 8:
        return nrows
    rows_budget = max(8, (budget // (m_tile * itemsize)) // 8 * 8)
    rows_cap = nrows if nrows % 8 == 0 else (nrows // 8) * 8
    return max(8, min(rows_cap, rows_budget))


def _pick_tiles(nrows, m, itemsize, budget):
    min_rows = nrows if nrows < 8 else 8
    m_tile = _pick_m_tile(m, itemsize, budget, min_rows)
    rows_tile = _pick_rows_tile(nrows, m_tile, itemsize, budget)
    return rows_tile, m_tile


def _bn_row_stats_kernel(x_ref, sum_ref, sumsq_ref, *, m_total, m_tile, mask_tail):
    """Accumulate per-row sum(x) and sum(x*x) across the lane (M) grid axis."""
    j = pl.program_id(1)

    @pl.when(j == 0)
    def _init():
        sum_ref[...] = jnp.zeros_like(sum_ref)
        sumsq_ref[...] = jnp.zeros_like(sumsq_ref)

    x = x_ref[...].astype(jnp.float32)                       # (rows_tile, m_tile)
    if mask_tail:
        # Partial last lane block: zero out-of-range lanes so sums stay exact.
        col = j * m_tile + lax.broadcasted_iota(jnp.int32, x.shape, 1)
        x = jnp.where(col < m_total, x, 0.0)
    sum_ref[...] += jnp.sum(x, axis=1, keepdims=True)
    sumsq_ref[...] += jnp.sum(x * x, axis=1, keepdims=True)


def _bn_apply_kernel(x_ref, scale_ref, bias_ref, y_ref):
    """y = x * scale[row] + bias[row] — one fused multiply-add per element."""
    x = x_ref[...].astype(jnp.float32)                       # (rows_tile, m_tile)
    y_ref[...] = (x * scale_ref[...] + bias_ref[...]).astype(y_ref.dtype)


def _row_stats(x_rm, rows_tile, m_tile):
    """Per-row sum / sum-of-squares of x_rm (NR, M); each output is (NR, 1) f32."""
    nrows, m = x_rm.shape
    grid = (pl.cdiv(nrows, rows_tile), pl.cdiv(m, m_tile))
    kernel = functools.partial(
        _bn_row_stats_kernel, m_total=m, m_tile=m_tile,
        mask_tail=(m % m_tile) != 0)
    return pl.pallas_call(
        kernel,
        out_shape=(jax.ShapeDtypeStruct((nrows, 1), jnp.float32),
                   jax.ShapeDtypeStruct((nrows, 1), jnp.float32)),
        grid_spec=pltpu.PrefetchScalarGridSpec(
            num_scalar_prefetch=0,
            grid=grid,
            in_specs=[pl.BlockSpec((rows_tile, m_tile), lambda i, j: (i, j))],
            out_specs=(pl.BlockSpec((rows_tile, 1), lambda i, j: (i, 0)),
                       pl.BlockSpec((rows_tile, 1), lambda i, j: (i, 0))),
        ),
        compiler_params=pltpu.CompilerParams(
            dimension_semantics=("parallel", "arbitrary"),
            vmem_limit_bytes=_VMEM_LIMIT_BYTES),
    )(x_rm)


def _apply_rows(x_rm, scale_r1, bias_r1, rows_tile, m_tile):
    """Tiled, fully-parallel elementwise y = x * scale[row] + bias[row]."""
    nrows, m = x_rm.shape
    grid = (pl.cdiv(nrows, rows_tile), pl.cdiv(m, m_tile))
    return pl.pallas_call(
        _bn_apply_kernel,
        out_shape=jax.ShapeDtypeStruct((nrows, m), x_rm.dtype),
        grid_spec=pltpu.PrefetchScalarGridSpec(
            num_scalar_prefetch=0,
            grid=grid,
            in_specs=[
                pl.BlockSpec((rows_tile, m_tile), lambda i, j: (i, j)),
                pl.BlockSpec((rows_tile, 1), lambda i, j: (i, 0)),
                pl.BlockSpec((rows_tile, 1), lambda i, j: (i, 0)),
            ],
            out_specs=pl.BlockSpec((rows_tile, m_tile), lambda i, j: (i, j)),
        ),
        compiler_params=pltpu.CompilerParams(
            dimension_semantics=("parallel", "parallel"),
            vmem_limit_bytes=_VMEM_LIMIT_BYTES),
    )(x_rm, scale_r1, bias_r1)


@functools.partial(jax.jit, static_argnames=("training", "eps", "momentum"))
def batch_norm_pallas(x_nchw, gamma, beta, moving_mean, moving_var,
                      training=True, eps=DEFAULT_EPS, momentum=DEFAULT_MOMENTUM):
    """Forward pass of the BatchNorm module (num_dims=4).

    x_nchw: (N, C, H, W); gamma/beta/moving_mean/moving_var: (1, C, 1, 1).
    Returns (Y, new_moving_mean, new_moving_var) with Y shaped (N, C, H, W).
    """
    N, C, H, W = x_nchw.shape
    M = H * W
    NC = N * C
    x_rm = x_nchw.reshape(NC, M)            # free reshape — NCHW is row-major

    itemsize = jnp.dtype(x_nchw.dtype).itemsize
    rows_s, m_s = _pick_tiles(NC, M, itemsize, _STATS_TILE_BYTES)
    rows_a, m_a = _pick_tiles(NC, M, itemsize, _APPLY_TILE_BYTES)

    if training:
        s_r, ss_r = _row_stats(x_rm, rows_s, m_s)            # (NC, 1) each, f32
        count = jnp.float32(N * M)
        s_c = s_r.reshape(N, C).sum(axis=0)                  # (C,)
        ss_c = ss_r.reshape(N, C).sum(axis=0)                # (C,)
        mean_c = s_c / count
        # TODO(synk): E[x^2]-E[x]^2 in f32 can cancel when |mean| >> std; a
        # shifted/two-pass variance would cost another full read of x.
        var_c = jnp.maximum(ss_c / count - mean_c * mean_c, 0.0)  # biased, as ref
    else:
        mean_c = moving_mean.reshape(C).astype(jnp.float32)
        var_c = moving_var.reshape(C).astype(jnp.float32)

    gamma_c = gamma.reshape(C).astype(jnp.float32)
    beta_c = beta.reshape(C).astype(jnp.float32)
    inv_std = lax.rsqrt(var_c + jnp.float32(eps))            # EUP rsqrt, no divide
    scale_c = gamma_c * inv_std
    bias_c = beta_c - mean_c * scale_c

    # Per-(n, c)-row scale/bias for the 2-D apply view — (NC, 1), negligible size.
    scale_r1 = jnp.tile(scale_c.reshape(1, C), (N, 1)).reshape(NC, 1)
    bias_r1 = jnp.tile(bias_c.reshape(1, C), (N, 1)).reshape(NC, 1)

    y = _apply_rows(x_rm, scale_r1, bias_r1, rows_a, m_a).reshape(N, C, H, W)

    if not training:
        return y, moving_mean, moving_var

    mean_b = mean_c.reshape(1, C, 1, 1)
    var_b = var_c.reshape(1, C, 1, 1)
    new_moving_mean = momentum * moving_mean + (1.0 - momentum) * mean_b
    # Faithful to the reference's `momentum * var + (1 - momentum) * var`
    # (which algebraically collapses to `var`); standard BatchNorm would blend
    # with the previous moving_var instead.
    new_moving_var = momentum * var_b + (1.0 - momentum) * var_b
    return y, new_moving_mean, new_moving_var


if __name__ == "__main__":
    key = jax.random.PRNGKey(0)
    N, C, H, W = 2, 4, 16, 16
    x = jax.random.uniform(key, (N, C, H, W), dtype=jnp.float32)

    # Parameter init matching BatchNorm.__init__ (num_dims=4).
    gamma = jnp.ones((1, C, 1, 1), jnp.float32)
    beta = jnp.zeros((1, C, 1, 1), jnp.float32)
    moving_mean = jnp.zeros((1, C, 1, 1), jnp.float32)
    moving_var = jnp.zeros((1, C, 1, 1), jnp.float32)

    # Training-mode forward.
    y, new_mm, new_mv = batch_norm_pallas(
        x, gamma, beta, moving_mean, moving_var, training=True)
    jax.block_until_ready((y, new_mm, new_mv))

    # Plain-JAX reference (same semantics as the PyTorch module).
    mean_ref = jnp.mean(x, axis=(0, 2, 3), keepdims=True)
    var_ref = jnp.mean((x - mean_ref) ** 2, axis=(0, 2, 3), keepdims=True)
    y_ref = gamma * (x - mean_ref) / jnp.sqrt(var_ref + DEFAULT_EPS) + beta
    mm_ref = DEFAULT_MOMENTUM * moving_mean + (1.0 - DEFAULT_MOMENTUM) * mean_ref
    mv_ref = var_ref  # the reference's moving_var update collapses to var

    assert jnp.allclose(y, y_ref, atol=1e-4, rtol=1e-4), "training output mismatch"
    assert jnp.allclose(new_mm, mm_ref, atol=1e-5, rtol=1e-5), "moving_mean mismatch"
    assert jnp.allclose(new_mv, mv_ref, atol=1e-5, rtol=1e-5), "moving_var mismatch"

    # Inference path reuses the same tiled apply kernel (moving stats -> scale/bias).
    y_eval, _, _ = batch_norm_pallas(
        x, gamma, beta, new_mm, new_mv, training=False)
    jax.block_until_ready(y_eval)
    y_eval_ref = gamma * (x - new_mm) / jnp.sqrt(new_mv + DEFAULT_EPS) + beta
    assert jnp.allclose(y_eval, y_eval_ref, atol=1e-4, rtol=1e-4), "eval mismatch"

    print("KERNEL_OK")
</pallas_src>

<mosaic_0001>
module attributes {stable_mosaic.version = 11 : i64} {
  func.func @_bn_row_stats_kernel(%arg0: i32, %arg1: i32, %arg2: memref<8x256xf32, #tpu.memory_space<vmem>>, %arg3: memref<8x1xf32, #tpu.memory_space<vmem>>, %arg4: memref<8x1xf32, #tpu.memory_space<vmem>>) attributes {dimension_semantics = [#tpu.dimension_semantics<parallel>, #tpu.dimension_semantics<arbitrary>], iteration_bounds = array<i64: 1, 1>, scalar_prefetch = 0 : i64, scratch_operands = 0 : i64, tpu.core_type = #tpu.core_type<tc>, window_params = [{transform_indices = @transform_0, window_bounds = array<i64: 8, 256>}, {transform_indices = @transform_1, window_bounds = array<i64: 8, 1>}, {transform_indices = @transform_2, window_bounds = array<i64: 8, 1>}]} {
    %c0_i32 = arith.constant 0 : i32
    %0 = arith.cmpi eq, %arg1, %c0_i32 : i32
    %1 = arith.extui %0 : i1 to i32
    %c0_i32_0 = arith.constant 0 : i32
    %2 = arith.cmpi ne, %1, %c0_i32_0 : i32
    scf.if %2 {
      %cst_11 = arith.constant 0.000000e+00 : f32
      %15 = vector.broadcast %cst_11 : f32 to vector<8x1xf32>
      %c0_12 = arith.constant 0 : index
      %c0_13 = arith.constant 0 : index
      %16 = vector.load %arg3[%c0_12, %c0_13] : memref<8x1xf32, #tpu.memory_space<vmem>>, vector<8x1xf32>
      tpu.vector_store %arg3[%c0_12, %c0_13], %15 {strides = array<i32>} : memref<8x1xf32, #tpu.memory_space<vmem>>, vector<8x1xf32>,
      %cst_14 = arith.constant 0.000000e+00 : f32
      %17 = vector.broadcast %cst_14 : f32 to vector<8x1xf32>
      %c0_15 = arith.constant 0 : index
      %c0_16 = arith.constant 0 : index
      %18 = vector.load %arg4[%c0_15, %c0_16] : memref<8x1xf32, #tpu.memory_space<vmem>>, vector<8x1xf32>
      tpu.vector_store %arg4[%c0_15, %c0_16], %17 {strides = array<i32>} : memref<8x1xf32, #tpu.memory_space<vmem>>, vector<8x1xf32>,
    } else {
    }
    %c0 = arith.constant 0 : index
    %c0_1 = arith.constant 0 : index
    %3 = vector.load %arg2[%c0, %c0_1] : memref<8x256xf32, #tpu.memory_space<vmem>>, vector<8x256xf32>
    %c0_2 = arith.constant 0 : index
    %c0_3 = arith.constant 0 : index
    %4 = vector.load %arg3[%c0_2, %c0_3] : memref<8x1xf32, #tpu.memory_space<vmem>>, vector<8x1xf32>
    %cst = arith.constant dense<0.000000e+00> : vector<8xf32>
    %5 = vector.multi_reduction <add>, %3, %cst [1] : vector<8x256xf32> to vector<8xf32>
    %6 = vector.shape_cast %5 : vector<8xf32> to vector<8x1xf32>
    %7 = arith.addf %4, %6 : vector<8x1xf32>
    %c0_4 = arith.constant 0 : index
    %c0_5 = arith.constant 0 : index
    %8 = vector.load %arg3[%c0_4, %c0_5] : memref<8x1xf32, #tpu.memory_space<vmem>>, vector<8x1xf32>
    tpu.vector_store %arg3[%c0_4, %c0_5], %7 {strides = array<i32>} : memref<8x1xf32, #tpu.memory_space<vmem>>, vector<8x1xf32>,
    %c0_6 = arith.constant 0 : index
    %c0_7 = arith.constant 0 : index
    %9 = vector.load %arg4[%c0_6, %c0_7] : memref<8x1xf32, #tpu.memory_space<vmem>>, vector<8x1xf32>
    %10 = arith.mulf %3, %3 : vector<8x256xf32>
    %cst_8 = arith.constant dense<0.000000e+00> : vector<8xf32>
    %11 = vector.multi_reduction <add>, %10, %cst_8 [1] : vector<8x256xf32> to vector<8xf32>
    %12 = vector.shape_cast %11 : vector<8xf32> to vector<8x1xf32>
    %13 = arith.addf %9, %12 : vector<8x1xf32>
    %c0_9 = arith.constant 0 : index
    %c0_10 = arith.constant 0 : index
    %14 = vector.load %arg4[%c0_9, %c0_10] : memref<8x1xf32, #tpu.memory_space<vmem>>, vector<8x1xf32>
    tpu.vector_store %arg4[%c0_9, %c0_10], %13 {strides = array<i32>} : memref<8x1xf32, #tpu.memory_space<vmem>>, vector<8x1xf32>,
    return
  }
  func.func @transform_0(%arg0: i32, %arg1: i32) -> (i32, i32) {
    %c0_i32 = arith.constant 0 : i32
    return %arg0, %arg1 : i32, i32
  }
  func.func @transform_1(%arg0: i32, %arg1: i32) -> (i32, i32) {
    %c0_i32 = arith.constant 0 : i32
    %c0_i32_0 = arith.constant 0 : i32
    return %arg0, %c0_i32 : i32, i32
  }
  func.func @transform_2(%arg0: i32, %arg1: i32) -> (i32, i32) {
    %c0_i32 = arith.constant 0 : i32
    %c0_i32_0 = arith.constant 0 : i32
    return %arg0, %c0_i32 : i32, i32
  }
}

module attributes {stable_mosaic.version = 11 : i64} {
  func.func @_bn_apply_kernel(%arg0: i32, %arg1: i32, %arg2: memref<8x256xf32, #tpu.memory_space<vmem>>, %arg3: memref<8x1xf32, #tpu.memory_space<vmem>>, %arg4: memref<8x1xf32, #tpu.memory_space<vmem>>, %arg5: memref<8x256xf32, #tpu.memory_space<vmem>>) attributes {dimension_semantics = [#tpu.dimension_semantics<parallel>, #tpu.dimension_semantics<parallel>], iteration_bounds = array<i64: 1, 1>, scalar_prefetch = 0 : i64, scratch_operands = 0 : i64, tpu.core_type = #tpu.core_type<tc>, window_params = [{transform_indices = @transform_0, window_bounds = array<i64: 8, 256>}, {transform_indices = @transform_1, window_bounds = array<i64: 8, 1>}, {transform_indices = @transform_2, window_bounds = array<i64: 8, 1>}, {transform_indices = @transform_3, window_bounds = array<i64: 8, 256>}]} {
    %c0 = arith.constant 0 : index
    %c0_0 = arith.constant 0 : index
    %0 = vector.load %arg2[%c0, %c0_0] : memref<8x256xf32, #tpu.memory_space<vmem>>, vector<8x256xf32>
    %c0_1 = arith.constant 0 : index
    %c0_2 = arith.constant 0 : index
    %1 = vector.load %arg3[%c0_1, %c0_2] : memref<8x1xf32, #tpu.memory_space<vmem>>, vector<8x1xf32>
    %2 = vector.broadcast %1 : vector<8x1xf32> to vector<8x256xf32>
    %3 = arith.mulf %0, %2 : vector<8x256xf32>
    %c0_3 = arith.constant 0 : index
    %c0_4 = arith.constant 0 : index
    %4 = vector.load %arg4[%c0_3, %c0_4] : memref<8x1xf32, #tpu.memory_space<vmem>>, vector<8x1xf32>
    %5 = vector.broadcast %4 : vector<8x1xf32> to vector<8x256xf32>
    %6 = arith.addf %3, %5 : vector<8x256xf32>
    %c0_5 = arith.constant 0 : index
    %c0_6 = arith.constant 0 : index
    %7 = vector.load %arg5[%c0_5, %c0_6] : memref<8x256xf32, #tpu.memory_space<vmem>>, vector<8x256xf32>
    tpu.vector_store %arg5[%c0_5, %c0_6], %6 {strides = array<i32>} : memref<8x256xf32, #tpu.memory_space<vmem>>, vector<8x256xf32>,
    return
  }
  func.func @transform_0(%arg0: i32, %arg1: i32) -> (i32, i32) {
    %c0_i32 = arith.constant 0 : i32
    return %arg0, %arg1 : i32, i32
  }
  func.func @transform_1(%arg0: i32, %arg1: i32) -> (i32, i32) {
    %c0_i32 = arith.constant 0 : i32
    %c0_i32_0 = arith.constant 0 : i32
    return %arg0, %c0_i32 : i32, i32
  }
  func.func @transform_2(%arg0: i32, %arg1: i32) -> (i32, i32) {
    %c0_i32 = arith.constant 0 : i32
    %c0_i32_0 = arith.constant 0 : i32
    return %arg0, %c0_i32 : i32, i32
  }
  func.func @transform_3(%arg0: i32, %arg1: i32) -> (i32, i32) {
    %c0_i32 = arith.constant 0 : i32
    return %arg0, %arg1 : i32, i32
  }
}

</mosaic_0001>

<llo_original>
// kernel: tile.14
$region0: #{tile.14}
  #allocation0 [shape = 's32[1]{0}', space=sflag, size = 0x4, scoped, tag = 'scoped memory for tile.14']
  %s0 = inlined_call_operand.vmem [shape: f32[4], index: 0, kind: input, shape index: {}]
  %s1 = inlined_call_operand.vmem [shape: f32[2,1,1,4], index: 1, kind: output, shape index: {}]
  // Predicated region
  $region2: #{tile.14} parent=0 // pred_check
    _
  $region3: #{tile.14} parent=0 // pred_check_branch
    %3 = sbr.rel (0) target = $region5
  $region4: #{tile.14} parent=0 // pred_region
    _
  $region5: #{tile.14} parent=0 // pred_fallthru
    _
  %v4 = vld [vmem:[%s0] ss:$0 sm:$0xff]
  %5 = vst [vmem:[%s1] sm:$0x3] %v4

// kernel: tile.0
$region0: #{tile.0}
  %s0 = inlined_call_operand.vmem [shape: f32[2,1,1,4], index: 0, kind: input, shape index: {}]
  %s1 = inlined_call_operand.vmem [shape: f32[8,1], index: 1, kind: output, shape index: {}]
  $region1: #{tile.0} parent=0
    #allocation0 [shape = 'u8[4096]{0}', space=vmem, size = 0x1000, scoped, tag = 'scoped mem for input reshape']
    %s3 = ssub.s32 4, 1
    %v4 = vld [vmem:[%s0] sm:%s3]
    %5 = vst [vmem:[#allocation0] sm:%s3] %v4
    %v6 = vld [vmem:[#allocation0] sm:$0x3]
    %vm7 = vcmask 7168
    %8 = vst.msk [vmem:[%s1] ss:$4 sm:$0x3] %vm7, %v6
    %v9 = vld [vmem:[#allocation0] sm:$0x3]
    %10 = vrot.lane.b32.xlu0 %v9, 127
    %v11 = vpop.permute.xlu0 %10
    %vm12 = vcmask 7168
    %s13 = scalar_lea.vmem %s1, 1
    %14 = vst.msk [vmem:[%s13] ss:$4 sm:$0x3] %vm12, %v11
    %v15 = vld [vmem:[#allocation0] sm:$0x3]
    %16 = vrot.lane.b32.xlu0 %v15, 126
    %v17 = vpop.permute.xlu0 %16
    %vm18 = vcmask 7168
    %s19 = scalar_lea.vmem %s1, 2
    %20 = vst.msk [vmem:[%s19] ss:$4 sm:$0x3] %vm18, %v17
    %v21 = vld [vmem:[#allocation0] sm:$0x3]
    %22 = vrot.lane.b32.xlu0 %v21, 125
    %v23 = vpop.permute.xlu0 %22
    %vm24 = vcmask 7168
    %s25 = scalar_lea.vmem %s1, 3
    %26 = vst.msk [vmem:[%s25] ss:$4 sm:$0x3] %vm24, %v23

// kernel: batch_norm_pallas.2
$region0: #{batch_norm_pallas.2}
  #allocation0 [shape = 'u32[]', space=smem, size = 0x4, offset = 0x4, fixed_abs, tag = 'smem constant byte address 0x4 - core index']
  #allocation1 [shape = 'u32[72,128]{1,0:T(1,128)}', space=vmem, size = 0x9000, scoped, tag = 'internal scratch']
  %s0 = inlined_call_operand.vmem [shape: f32[8,256], index: 0, kind: input, shape index: {}]
  %s1 = inlined_call_operand.vmem [shape: f32[8,1], index: 1, kind: output, shape index: {0}]
  %s2 = inlined_call_operand.vmem [shape: f32[8,1], index: 2, kind: output, shape index: {1}]
  %3 = xla_tuple %s1, %s2
  %s4 = sld [smem:[#allocation0]]
  $region26: #{batch_norm_pallas.2} parent=0
    _
  %s6 = ssub.s32 1, %s4
  %s7 = scalar_select 0, %s6, %s4
  // Predicated region
  $region2: #{batch_norm_pallas.2} parent=0 // pred_check
    _
  $region3: #{batch_norm_pallas.2} parent=0 // pred_check_branch
    %9 = sbr.rel (0) target = $region5
  $region4: #{batch_norm_pallas.2} parent=0 // pred_region
    _
  $region5: #{batch_norm_pallas.2} parent=0 // pred_fallthru
    _
  %p10 = scmp.eq.s32.totalorder 0, 0
  // Predicated region
  $region6: #{batch_norm_pallas.2} parent=0 // pred_check
    %p11 = pneg %p10
  $region7: #{batch_norm_pallas.2} parent=0 // pred_check_branch
    %13 = sbr.rel (%p11) target = $region9
  $region8: #{batch_norm_pallas.2} parent=0 // pred_region
    %vm14 = vcmask 7168
    %15 = vst.msk [vmem:[%s1] sm:$0xff] %vm14, 0.0
    %16 = vst.msk [vmem:[%s2] sm:$0xff] %vm14, 0.0
  $region9: #{batch_norm_pallas.2} parent=0 // pred_fallthru
    _
  %v17 = vld [vmem:[%s0] sm:$0xff]
  %v18 = vld [vmem:[%s0 + $0x8] sm:$0xff]
  %v19 = vld [vmem:[%s1] sm:$0xff]
  %v20 = vadd.f32 %v17, %v18
  %21 = vadd.xlane.f32.xlu0 %v20
  %v22 = vpop.xlane.xlu0 %21
  %v23 = vadd.f32 %v19, %v22
  %vm24 = vcmask 7168
  %25 = vst.msk [vmem:[%s1] sm:$0xff] %vm24, %v23
  %v26 = vld [vmem:[%s2] sm:$0xff]
  %v27 = vmul.f32 %v17, %v17
  %v28 = vmul.f32 %v18, %v18
  %v29 = vadd.f32 %v27, %v28
  %30 = vadd.xlane.f32.xlu0 %v29
  %v31 = vpop.xlane.xlu0 %30
  %v32 = vadd.f32 %v26, %v31
  %33 = vst.msk [vmem:[%s2] sm:$0xff] %vm24, %v32
  // Predicated region
  $region10: #{batch_norm_pallas.2} parent=0 // pred_check
    _
  $region11: #{batch_norm_pallas.2} parent=0 // pred_check_branch
    %35 = sbr.rel (0) target = $region13
  $region12: #{batch_norm_pallas.2} parent=0 // pred_region
    _
  $region13: #{batch_norm_pallas.2} parent=0 // pred_fallthru
    _
  // Predicated region
  $region14: #{batch_norm_pallas.2} parent=0 // pred_check
    _
  $region15: #{batch_norm_pallas.2} parent=0 // pred_check_branch
    %37 = sbr.rel (0) target = $region17
  $region16: #{batch_norm_pallas.2} parent=0 // pred_region
    _
  $region17: #{batch_norm_pallas.2} parent=0 // pred_fallthru
    _
  // Predicated region
  $region18: #{batch_norm_pallas.2} parent=0 // pred_check
    _
  $region19: #{batch_norm_pallas.2} parent=0 // pred_check_branch
    %39 = sbr.rel (0) target = $region21
  $region20: #{batch_norm_pallas.2} parent=0 // pred_region
    _
  $region21: #{batch_norm_pallas.2} parent=0 // pred_fallthru
    _
  // Predicated region
  $region22: #{batch_norm_pallas.2} parent=0 // pred_check
    _
  $region23: #{batch_norm_pallas.2} parent=0 // pred_check_branch
    %41 = sbr.rel (0) target = $region25
  $region24: #{batch_norm_pallas.2} parent=0 // pred_region
    _
  $region25: #{batch_norm_pallas.2} parent=0 // pred_fallthru
    _

// kernel: batch_norm_pallas.3
$region0: #{batch_norm_pallas.3}
  #allocation0 [shape = 'u32[]', space=smem, size = 0x4, offset = 0x4, fixed_abs, tag = 'smem constant byte address 0x4 - core index']
  #allocation1 [shape = 'u32[72,128]{1,0:T(1,128)}', space=vmem, size = 0x9000, scoped, tag = 'internal scratch']
  %s0 = inlined_call_operand.vmem [shape: f32[8,256], index: 0, kind: input, shape index: {}]
  %s1 = inlined_call_operand.vmem [shape: f32[8,1], index: 1, kind: input, shape index: {}]
  %s2 = inlined_call_operand.vmem [shape: f32[8,1], index: 2, kind: input, shape index: {}]
  %s3 = inlined_call_operand.vmem [shape: f32[8,256], index: 3, kind: output, shape index: {}]
  %s4 = sld [smem:[#allocation0]]
  $region22: #{batch_norm_pallas.3} parent=0
    _
  %s6 = ssub.s32 1, %s4
  %s7 = scalar_select 0, %s6, %s4
  // Predicated region
  $region2: #{batch_norm_pallas.3} parent=0 // pred_check
    _
  $region3: #{batch_norm_pallas.3} parent=0 // pred_check_branch
    %9 = sbr.rel (0) target = $region5
  $region4: #{batch_norm_pallas.3} parent=0 // pred_region
    _
  $region5: #{batch_norm_pallas.3} parent=0 // pred_fallthru
    _
  // Predicated region
  $region6: #{batch_norm_pallas.3} parent=0 // pred_check
    _
  $region7: #{batch_norm_pallas.3} parent=0 // pred_check_branch
    %11 = sbr.rel (0) target = $region9
  $region8: #{batch_norm_pallas.3} parent=0 // pred_region
    _
  $region9: #{batch_norm_pallas.3} parent=0 // pred_fallthru
    _
  // Predicated region
  $region10: #{batch_norm_pallas.3} parent=0 // pred_check
    _
  $region11: #{batch_norm_pallas.3} parent=0 // pred_check_branch
    %13 = sbr.rel (0) target = $region13
  $region12: #{batch_norm_pallas.3} parent=0 // pred_region
    _
  $region13: #{batch_norm_pallas.3} parent=0 // pred_fallthru
    _
  %v14 = vld [vmem:[%s0] sm:$0xff]
  %v15 = vld [vmem:[%s0 + $0x8] sm:$0xff]
  %v16 = vld [vmem:[%s1] sm:$0xff]
  %18 = vset.pattern.permute.xlu0 0
  %19 = vperm.xlu0 %18, %v16
  %v20 = vpop.permute.xlu0 %19
  %v22 = vmul.f32 %v14, %v20
  %v23 = vmul.f32 %v15, %v20
  %v24 = vld [vmem:[%s2] sm:$0xff]
  %26 = vset.pattern.permute.xlu0 0
  %27 = vperm.xlu0 %26, %v24
  %v28 = vpop.permute.xlu0 %27
  %v30 = vadd.f32 %v22, %v28
  %v31 = vadd.f32 %v23, %v28
  %32 = vst [vmem:[%s3] sm:$0xff] %v30
  %33 = vst [vmem:[%s3 + $0x8] sm:$0xff] %v31
  // Predicated region
  $region14: #{batch_norm_pallas.3} parent=0 // pred_check
    _
  $region15: #{batch_norm_pallas.3} parent=0 // pred_check_branch
    %35 = sbr.rel (0) target = $region17
  $region16: #{batch_norm_pallas.3} parent=0 // pred_region
    _
  $region17: #{batch_norm_pallas.3} parent=0 // pred_fallthru
    _
  // Predicated region
  $region18: #{batch_norm_pallas.3} parent=0 // pred_check
    _
  $region19: #{batch_norm_pallas.3} parent=0 // pred_check_branch
    %37 = sbr.rel (0) target = $region21
  $region20: #{batch_norm_pallas.3} parent=0 // pred_region
    _
  $region21: #{batch_norm_pallas.3} parent=0 // pred_fallthru
    _

</llo_original>
